<compile_context>
chip_gen: v5e
topology: v5e:2x2
jax: 0.10.0
libtpu: 0.0.40
codegen_flags: <defaults>
</compile_context>

<pallas_src>
import functools

import jax
import jax.numpy as jnp
from jax.experimental import pallas as pl
from jax.experimental.pallas import tpu as pltpu


def qnetwork_kernel(x_ref, w1_ref, b1_ref, w2_ref, b2_ref, w3_ref, b3_ref,
                    out_ref):
    # fc1 + relu (bf16 MXU inputs, f32 accumulation, f32 bias/ReLU epilogue,
    # bf16 result for the next matmul).
    h1 = jnp.dot(x_ref[...].astype(jnp.bfloat16), w1_ref[...],
                 preferred_element_type=jnp.float32)
    h1 = jnp.maximum(h1 + b1_ref[...], 0.0).astype(jnp.bfloat16)
    # fc2 + relu
    h2 = jnp.dot(h1, w2_ref[...], preferred_element_type=jnp.float32)
    h2 = jnp.maximum(h2 + b2_ref[...], 0.0).astype(jnp.bfloat16)
    # fc3 (no activation); unpadded (tb, action_size) f32 store.
    out = jnp.dot(h2, w3_ref[...], preferred_element_type=jnp.float32)
    out_ref[...] = (out + b3_ref[...]).astype(out_ref.dtype)


@functools.partial(jax.jit, static_argnames=("tile_b",))
def qnetwork_forward(x, params, *, tile_b=4096):
    """x: [B, state_size] float32 or bfloat16.
    params: dict of [in, out] bf16 weights / [1, out] f32 biases."""
    w1, b1 = params["w1"], params["b1"]
    w2, b2 = params["w2"], params["b2"]
    w3, b3 = params["w3"], params["b3"]

    B, S = x.shape
    h1_dim = w1.shape[1]            # 128
    h2_dim = w2.shape[1]            # 64
    action_size = w3.shape[1]       # e.g. 8

    # Batch tile: multiple of 8 (f32 sublanes). For B <= tile_b, aim for
    # >= 2 grid steps so v7x can shard the batch grid across both TCs.
    if B <= 8:
        tb = B                                      # block == full array dim
    else:
        tb = min(tile_b, 8 * pl.cdiv(pl.cdiv(B, 2), 8))
    grid = (pl.cdiv(B, tb),)

    def batch_map(i):
        return (i, 0)

    def const_map(i):
        return (0, 0)

    weights = (w1, b1, w2, b2, w3, b3)
    flops = 2 * B * (S * h1_dim + h1_dim * h2_dim + h2_dim * action_size)
    bytes_accessed = (x.size * x.dtype.itemsize
                      + sum(int(w.size) * w.dtype.itemsize for w in weights)
                      + B * action_size * 4)

    out = pl.pallas_call(
        qnetwork_kernel,
        out_shape=jax.ShapeDtypeStruct((B, action_size), jnp.float32),
        grid=grid,
        in_specs=[
            pl.BlockSpec((tb, S), batch_map),                  # x   (batch-tiled)
            pl.BlockSpec((S, h1_dim), const_map),              # w1  (VMEM-resident)
            pl.BlockSpec((1, h1_dim), const_map),              # b1
            pl.BlockSpec((h1_dim, h2_dim), const_map),         # w2
            pl.BlockSpec((1, h2_dim), const_map),              # b2
            pl.BlockSpec((h2_dim, action_size), const_map),    # w3
            pl.BlockSpec((1, action_size), const_map),         # b3
        ],
        out_specs=pl.BlockSpec((tb, action_size), batch_map),
        compiler_params=pltpu.CompilerParams(
            dimension_semantics=("parallel",)),
        cost_estimate=pl.CostEstimate(
            flops=flops, transcendentals=0, bytes_accessed=bytes_accessed),
    )(x, *weights)

    return out


def init_params(key, state_size, action_size):
    """Deterministic synthetic init (PyTorch-style uniform bounds).

    Weights stored [in, out] in bf16 (halves HBM/VMEM traffic; f32 accumulation
    in the kernel), biases in f32. All layout work is done here, once, not in
    the per-call forward.
    """
    def linear(key, fan_in, fan_out):
        kw, kb = jax.random.split(key)
        bound = 1.0 / jnp.sqrt(jnp.float32(fan_in))
        w = jax.random.uniform(kw, (fan_in, fan_out), jnp.float32, -bound, bound)
        b = jax.random.uniform(kb, (1, fan_out), jnp.float32, -bound, bound)
        return w.astype(jnp.bfloat16), b

    k1, k2, k3 = jax.random.split(key, 3)
    w1, b1 = linear(k1, state_size, 128)
    w2, b2 = linear(k2, 128, 64)
    w3, b3 = linear(k3, 64, action_size)
    return {"w1": w1, "b1": b1, "w2": w2, "b2": b2, "w3": w3, "b3": b3}


def qnetwork_ref(x, params):
    """Pure-JAX reference mirroring the kernel's dtype path (bf16 mul, f32 acc)."""
    h1 = jnp.maximum(
        jnp.dot(x.astype(jnp.bfloat16), params["w1"],
                preferred_element_type=jnp.float32) + params["b1"], 0.0)
    h2 = jnp.maximum(
        jnp.dot(h1.astype(jnp.bfloat16), params["w2"],
                preferred_element_type=jnp.float32) + params["b2"], 0.0)
    return jnp.dot(h2.astype(jnp.bfloat16), params["w3"],
                   preferred_element_type=jnp.float32) + params["b3"]


if __name__ == "__main__":
    state_size = 32
    action_size = 8
    batch = 8

    key = jax.random.PRNGKey(0)
    kx, kp = jax.random.split(key)
    x = jax.random.normal(kx, (batch, state_size), jnp.float32)
    params = init_params(kp, state_size, action_size)

    out = qnetwork_forward(x, params)
    out = jax.block_until_ready(out)

    ref = qnetwork_ref(x, params)
    assert out.shape == (batch, action_size)
    assert jnp.allclose(out, ref, atol=1e-3, rtol=1e-3)

    print("KERNEL_OK")
</pallas_src>

<mosaic_0001>
module attributes {stable_mosaic.version = 11 : i64} {
  func.func @qnetwork_kernel(%arg0: i32, %arg1: memref<8x32xf32, #tpu.memory_space<vmem>>, %arg2: memref<32x128xbf16, #tpu.memory_space<vmem>>, %arg3: memref<1x128xf32, #tpu.memory_space<vmem>>, %arg4: memref<128x64xbf16, #tpu.memory_space<vmem>>, %arg5: memref<1x64xf32, #tpu.memory_space<vmem>>, %arg6: memref<64x8xbf16, #tpu.memory_space<vmem>>, %arg7: memref<1x8xf32, #tpu.memory_space<vmem>>, %arg8: memref<8x8xf32, #tpu.memory_space<vmem>>) attributes {dimension_semantics = [#tpu.dimension_semantics<parallel>], iteration_bounds = array<i64: 1>, scalar_prefetch = 0 : i64, scratch_operands = 0 : i64, tpu.core_type = #tpu.core_type<tc>, window_params = [{transform_indices = @transform_0, window_bounds = array<i64: 8, 32>}, {pipeline_mode = #tpu.pipeline_mode<synchronous>, transform_indices = @transform_1, window_bounds = array<i64: 32, 128>}, {pipeline_mode = #tpu.pipeline_mode<synchronous>, transform_indices = @transform_2, window_bounds = array<i64: 1, 128>}, {pipeline_mode = #tpu.pipeline_mode<synchronous>, transform_indices = @transform_3, window_bounds = array<i64: 128, 64>}, {pipeline_mode = #tpu.pipeline_mode<synchronous>, transform_indices = @transform_4, window_bounds = array<i64: 1, 64>}, {pipeline_mode = #tpu.pipeline_mode<synchronous>, transform_indices = @transform_5, window_bounds = array<i64: 64, 8>}, {pipeline_mode = #tpu.pipeline_mode<synchronous>, transform_indices = @transform_6, window_bounds = array<i64: 1, 8>}, {transform_indices = @transform_7, window_bounds = array<i64: 8, 8>}]} {
    %c0 = arith.constant 0 : index
    %c0_0 = arith.constant 0 : index
    %0 = vector.load %arg1[%c0, %c0_0] : memref<8x32xf32, #tpu.memory_space<vmem>>, vector<8x32xf32>
    %1 = arith.truncf %0 : vector<8x32xf32> to vector<8x32xbf16>
    %c0_1 = arith.constant 0 : index
    %c0_2 = arith.constant 0 : index
    %2 = vector.load %arg2[%c0_1, %c0_2] : memref<32x128xbf16, #tpu.memory_space<vmem>>, vector<32x128xbf16>
    %cst = arith.constant dense<0.000000e+00> : vector<8x128xf32>
    %3 = tpu.matmul %1, %2, %cst {dimension_numbers = #tpu.dot_dimension_numbers<[1], [0], [0], [1], [0, 0, 1, 1], [], []>} : vector<8x32xbf16>, vector<32x128xbf16>, vector<8x128xf32> -> vector<8x128xf32>
    %c0_3 = arith.constant 0 : index
    %c0_4 = arith.constant 0 : index
    %4 = vector.load %arg3[%c0_3, %c0_4] : memref<1x128xf32, #tpu.memory_space<vmem>>, vector<1x128xf32>
    %5 = vector.broadcast %4 : vector<1x128xf32> to vector<8x128xf32>
    %6 = arith.addf %3, %5 : vector<8x128xf32>
    %cst_5 = arith.constant 0.000000e+00 : f32
    %7 = vector.broadcast %cst_5 : f32 to vector<8x128xf32>
    %8 = arith.maximumf %6, %7 : vector<8x128xf32>
    %9 = arith.truncf %8 : vector<8x128xf32> to vector<8x128xbf16>
    %c0_6 = arith.constant 0 : index
    %c0_7 = arith.constant 0 : index
    %10 = vector.load %arg4[%c0_6, %c0_7] : memref<128x64xbf16, #tpu.memory_space<vmem>>, vector<128x64xbf16>
    %cst_8 = arith.constant dense<0.000000e+00> : vector<8x64xf32>
    %11 = tpu.matmul %9, %10, %cst_8 {dimension_numbers = #tpu.dot_dimension_numbers<[1], [0], [0], [1], [0, 0, 1, 1], [], []>} : vector<8x128xbf16>, vector<128x64xbf16>, vector<8x64xf32> -> vector<8x64xf32>
    %c0_9 = arith.constant 0 : index
    %c0_10 = arith.constant 0 : index
    %12 = vector.load %arg5[%c0_9, %c0_10] : memref<1x64xf32, #tpu.memory_space<vmem>>, vector<1x64xf32>
    %13 = vector.broadcast %12 : vector<1x64xf32> to vector<8x64xf32>
    %14 = arith.addf %11, %13 : vector<8x64xf32>
    %cst_11 = arith.constant 0.000000e+00 : f32
    %15 = vector.broadcast %cst_11 : f32 to vector<8x64xf32>
    %16 = arith.maximumf %14, %15 : vector<8x64xf32>
    %17 = arith.truncf %16 : vector<8x64xf32> to vector<8x64xbf16>
    %c0_12 = arith.constant 0 : index
    %c0_13 = arith.constant 0 : index
    %18 = vector.load %arg6[%c0_12, %c0_13] : memref<64x8xbf16, #tpu.memory_space<vmem>>, vector<64x8xbf16>
    %cst_14 = arith.constant dense<0.000000e+00> : vector<8x8xf32>
    %19 = tpu.matmul %17, %18, %cst_14 {dimension_numbers = #tpu.dot_dimension_numbers<[1], [0], [0], [1], [0, 0, 1, 1], [], []>} : vector<8x64xbf16>, vector<64x8xbf16>, vector<8x8xf32> -> vector<8x8xf32>
    %c0_15 = arith.constant 0 : index
    %c0_16 = arith.constant 0 : index
    %20 = vector.load %arg7[%c0_15, %c0_16] : memref<1x8xf32, #tpu.memory_space<vmem>>, vector<1x8xf32>
    %21 = vector.broadcast %20 : vector<1x8xf32> to vector<8x8xf32>
    %22 = arith.addf %19, %21 : vector<8x8xf32>
    %c0_17 = arith.constant 0 : index
    %c0_18 = arith.constant 0 : index
    %23 = vector.load %arg8[%c0_17, %c0_18] : memref<8x8xf32, #tpu.memory_space<vmem>>, vector<8x8xf32>
    tpu.vector_store %arg8[%c0_17, %c0_18], %22 {strides = array<i32>} : memref<8x8xf32, #tpu.memory_space<vmem>>, vector<8x8xf32>,
    return
  }
  func.func @transform_0(%arg0: i32) -> (i32, i32) {
    %c0_i32 = arith.constant 0 : i32
    %c0_i32_0 = arith.constant 0 : i32
    return %arg0, %c0_i32 : i32, i32
  }
  func.func @transform_1(%arg0: i32) -> (i32, i32) {
    %c0_i32 = arith.constant 0 : i32
    %c0_i32_0 = arith.constant 0 : i32
    %c0_i32_1 = arith.constant 0 : i32
    return %c0_i32, %c0_i32_0 : i32, i32
  }
  func.func @transform_2(%arg0: i32) -> (i32, i32) {
    %c0_i32 = arith.constant 0 : i32
    %c0_i32_0 = arith.constant 0 : i32
    %c0_i32_1 = arith.constant 0 : i32
    return %c0_i32, %c0_i32_0 : i32, i32
  }
  func.func @transform_3(%arg0: i32) -> (i32, i32) {
    %c0_i32 = arith.constant 0 : i32
    %c0_i32_0 = arith.constant 0 : i32
    %c0_i32_1 = arith.constant 0 : i32
    return %c0_i32, %c0_i32_0 : i32, i32
  }
  func.func @transform_4(%arg0: i32) -> (i32, i32) {
    %c0_i32 = arith.constant 0 : i32
    %c0_i32_0 = arith.constant 0 : i32
    %c0_i32_1 = arith.constant 0 : i32
    return %c0_i32, %c0_i32_0 : i32, i32
  }
  func.func @transform_5(%arg0: i32) -> (i32, i32) {
    %c0_i32 = arith.constant 0 : i32
    %c0_i32_0 = arith.constant 0 : i32
    %c0_i32_1 = arith.constant 0 : i32
    return %c0_i32, %c0_i32_0 : i32, i32
  }
  func.func @transform_6(%arg0: i32) -> (i32, i32) {
    %c0_i32 = arith.constant 0 : i32
    %c0_i32_0 = arith.constant 0 : i32
    %c0_i32_1 = arith.constant 0 : i32
    return %c0_i32, %c0_i32_0 : i32, i32
  }
  func.func @transform_7(%arg0: i32) -> (i32, i32) {
    %c0_i32 = arith.constant 0 : i32
    %c0_i32_0 = arith.constant 0 : i32
    return %arg0, %c0_i32 : i32, i32
  }
}

</mosaic_0001>

<llo_original>
// kernel: qnetwork_forward.1
$region0: #{qnetwork_forward.1}
  #allocation0 [shape = 'u32[]', space=smem, size = 0x4, offset = 0x4, fixed_abs, tag = 'smem constant byte address 0x4 - core index']
  #allocation1 [shape = 'u32[72,128]{1,0:T(1,128)}', space=vmem, size = 0x9000, scoped, tag = 'internal scratch']
  %s0 = inlined_call_operand.vmem [shape: f32[8,32], index: 0, kind: input, shape index: {}]
  %s1 = inlined_call_operand.vmem [shape: bf16[32,128], index: 1, kind: input, shape index: {}]
  %s2 = inlined_call_operand.vmem [shape: f32[1,128], index: 2, kind: input, shape index: {}]
  %s3 = inlined_call_operand.vmem [shape: bf16[128,64], index: 3, kind: input, shape index: {}]
  %s4 = inlined_call_operand.vmem [shape: f32[1,64], index: 4, kind: input, shape index: {}]
  %s5 = inlined_call_operand.vmem [shape: bf16[64,8], index: 5, kind: input, shape index: {}]
  %s6 = inlined_call_operand.vmem [shape: f32[1,8], index: 6, kind: input, shape index: {}]
  %s7 = inlined_call_operand.hbm [shape: f32[8,8], index: 7, kind: output, shape index: {}]
  %s8 = sld [smem:[#allocation0]]
  $region38: #{qnetwork_forward.1} parent=0
    _
  %s10 = ssub.s32 1, %s8
  %s11 = scalar_select 0, %s10, %s8
  $region1: #{qnetwork_forward.1} parent=0
    #allocation2 [shape = 'u8[4096]{0}', space=vmem, size = 0x1000, scoped, tag = 'output window, operand 0, single buffered']
    #allocation3 [shape = 's32[1]{0}', space=sflag, size = 0x4, scoped, tag = 'scoped memory for qnetwork_forward.1']
    %12 = vsyncpa [#allocation3], 0
    // Predicated region
    $region2: #{qnetwork_forward.1} parent=1 // pred_check
      _
    $region3: #{qnetwork_forward.1} parent=1 // pred_check_branch
      %14 = sbr.rel (0) target = $region5
    $region4: #{qnetwork_forward.1} parent=1 // pred_region
      _
    $region5: #{qnetwork_forward.1} parent=1 // pred_fallthru
      _
    // Predicated region
    $region6: #{qnetwork_forward.1} parent=1 // pred_check
      _
    $region7: #{qnetwork_forward.1} parent=1 // pred_check_branch
      %16 = sbr.rel (0) target = $region9
    $region8: #{qnetwork_forward.1} parent=1 // pred_region
      _
    $region9: #{qnetwork_forward.1} parent=1 // pred_fallthru
      _
    // Predicated region
    $region10: #{qnetwork_forward.1} parent=1 // pred_check
      _
    $region11: #{qnetwork_forward.1} parent=1 // pred_check_branch
      %18 = sbr.rel (0) target = $region13
    $region12: #{qnetwork_forward.1} parent=1 // pred_region
      _
    $region13: #{qnetwork_forward.1} parent=1 // pred_fallthru
      _
    // Predicated region
    $region14: #{qnetwork_forward.1} parent=1 // pred_check
      _
    $region15: #{qnetwork_forward.1} parent=1 // pred_check_branch
      %20 = sbr.rel (0) target = $region17
    $region16: #{qnetwork_forward.1} parent=1 // pred_region
      _
    $region17: #{qnetwork_forward.1} parent=1 // pred_fallthru
      _
    // Predicated region
    $region18: #{qnetwork_forward.1} parent=1 // pred_check
      _
    $region19: #{qnetwork_forward.1} parent=1 // pred_check_branch
      %22 = sbr.rel (0) target = $region21
    $region20: #{qnetwork_forward.1} parent=1 // pred_region
      _
    $region21: #{qnetwork_forward.1} parent=1 // pred_fallthru
      _
    // Predicated region
    $region22: #{qnetwork_forward.1} parent=1 // pred_check
      _
    $region23: #{qnetwork_forward.1} parent=1 // pred_check_branch
      %24 = sbr.rel (0) target = $region25
    $region24: #{qnetwork_forward.1} parent=1 // pred_region
      _
    $region25: #{qnetwork_forward.1} parent=1 // pred_fallthru
      _
    // Predicated region
    $region26: #{qnetwork_forward.1} parent=1 // pred_check
      _
    $region27: #{qnetwork_forward.1} parent=1 // pred_check_branch
      %26 = sbr.rel (0) target = $region29
    $region28: #{qnetwork_forward.1} parent=1 // pred_region
      _
    $region29: #{qnetwork_forward.1} parent=1 // pred_fallthru
      _
    %v28 = vld [vmem:[%s0] sm:$0xff]
    %v29 = vpack.c.bf16 %v28, %v28
    %v30 = vld [vmem:[%s1] sm:$0xf]
    %v31 = vld [vmem:[%s1 + $0x4] sm:$0xf]
    %v32 = vld [vmem:[%s1 + $0x8] sm:$0xf]
    %v33 = vld [vmem:[%s1 + $0xc] sm:$0xf]
    %v34 = vld [vmem:[%s2] sm:$0x1]
    %v36 = vperm.slane %v34, 0
    %v42 = vunpack.c.l.b16 %v30
    %v43 = vunpack.c.l.b16 %v31
    %v44 = vunpack.c.l.b16 %v32
    %v45 = vunpack.c.l.b16 %v33
    %v46 = vpack.c.b16 %v43, %v42
    %v47 = vpack.c.b16 %v45, %v44
    %vm50 = vcmask 261120
    %v52 = vsel %vm50, %v29, 0
    %54 = vmatpush.bf16.msra.mxu0 0
    %55 = vmatpush.bf16.msra.mxu0 0
    %56 = vmatpush.bf16.msra.mxu0 0
    %57 = vmatpush.bf16.msra.mxu0 0
    %58 = vmatpush.bf16.msra.mxu0 0
    %59 = vmatpush.bf16.msra.mxu0 0
    %60 = vmatpush.bf16.msra.mxu0 %v47
    %61 = vmatpush.bf16.msra.mxu0 %v46
    %62 = vmatmul.bf16.gmra.mxu0 %v52
    %v63 = vpop.f32.mrf.mxu0
    %v64 = vadd.f32 %v36, %v63
    %v65 = vpop.f32.mrf.mxu0
    %66 = vdwg.mxu0
    %v67 = vmax.f32 %v64, 0.0
    %v68 = vpack.c.bf16 %v67, %v67
    %v69 = vld [vmem:[%s3] sm:$0xf]
    %v70 = vld [vmem:[%s3 + $0x4] sm:$0xf]
    %v71 = vld [vmem:[%s3 + $0x8] sm:$0xf]
    %v72 = vld [vmem:[%s3 + $0xc] sm:$0xf]
    %v73 = vld [vmem:[%s3 + $0x10] sm:$0xf]
    %v74 = vld [vmem:[%s3 + $0x14] sm:$0xf]
    %v75 = vld [vmem:[%s3 + $0x18] sm:$0xf]
    %v76 = vld [vmem:[%s3 + $0x1c] sm:$0xf]
    %v77 = vld [vmem:[%s3 + $0x20] sm:$0xf]
    %v78 = vld [vmem:[%s3 + $0x24] sm:$0xf]
    %v79 = vld [vmem:[%s3 + $0x28] sm:$0xf]
    %v80 = vld [vmem:[%s3 + $0x2c] sm:$0xf]
    %v81 = vld [vmem:[%s3 + $0x30] sm:$0xf]
    %v82 = vld [vmem:[%s3 + $0x34] sm:$0xf]
    %v83 = vld [vmem:[%s3 + $0x38] sm:$0xf]
    %v84 = vld [vmem:[%s3 + $0x3c] sm:$0xf]
    %v85 = vld [vmem:[%s4] sm:$0x1]
    %v87 = vperm.slane %v85, 0
    %v105 = vunpack.c.l.b16 %v69
    %v106 = vunpack.c.l.b16 %v70
    %v107 = vunpack.c.l.b16 %v71
    %v108 = vunpack.c.l.b16 %v72
    %v109 = vunpack.c.l.b16 %v73
    %v110 = vunpack.c.l.b16 %v74
    %v111 = vunpack.c.l.b16 %v75
    %v112 = vunpack.c.l.b16 %v76
    %v113 = vunpack.c.l.b16 %v77
    %v114 = vunpack.c.l.b16 %v78
    %v115 = vunpack.c.l.b16 %v79
    %v116 = vunpack.c.l.b16 %v80
    %v117 = vunpack.c.l.b16 %v81
    %v118 = vunpack.c.l.b16 %v82
    %v119 = vunpack.c.l.b16 %v83
    %v120 = vunpack.c.l.b16 %v84
    %v121 = vpack.c.b16 %v106, %v105
    %v122 = vpack.c.b16 %v108, %v107
    %v123 = vpack.c.b16 %v110, %v109
    %v124 = vpack.c.b16 %v112, %v111
    %v125 = vpack.c.b16 %v114, %v113
    %v126 = vpack.c.b16 %v116, %v115
    %v127 = vpack.c.b16 %v118, %v117
    %v128 = vpack.c.b16 %v120, %v119
    %137 = vmatpush.bf16.msra.mxu0 %v128
    %138 = vmatpush.bf16.msra.mxu0 %v127
    %139 = vmatpush.bf16.msra.mxu0 %v126
    %140 = vmatpush.bf16.msra.mxu0 %v125
    %141 = vmatpush.bf16.msra.mxu0 %v124
    %142 = vmatpush.bf16.msra.mxu0 %v123
    %143 = vmatpush.bf16.msra.mxu0 %v122
    %144 = vmatpush.bf16.msra.mxu0 %v121
    %145 = vmatmul.bf16.gmra.mxu0 %v68
    %v146 = vpop.f32.mrf.mxu0
    %v147 = vadd.f32 %v87, %v146
    %v148 = vpop.f32.mrf.mxu0
    %149 = vdwg.mxu0
    %v150 = vmax.f32 %v147, 0.0
    %v151 = vpack.c.bf16 %v150, %v150
    %v152 = vld [vmem:[%s5] sm:$0xf]
    %v153 = vld [vmem:[%s5 + $0x4] sm:$0xf]
    %v154 = vld [vmem:[%s5 + $0x8] sm:$0xf]
    %v155 = vld [vmem:[%s5 + $0xc] sm:$0xf]
    %v156 = vld [vmem:[%s5 + $0x10] sm:$0xf]
    %v157 = vld [vmem:[%s5 + $0x14] sm:$0xf]
    %v158 = vld [vmem:[%s5 + $0x18] sm:$0xf]
    %v159 = vld [vmem:[%s5 + $0x1c] sm:$0xf]
    %v160 = vld [vmem:[%s6] sm:$0x1]
    %v162 = vperm.slane %v160, 0
    %v172 = vunpack.c.l.b16 %v152
    %v173 = vunpack.c.l.b16 %v153
    %v174 = vunpack.c.l.b16 %v154
    %v175 = vunpack.c.l.b16 %v155
    %v176 = vunpack.c.l.b16 %v156
    %v177 = vunpack.c.l.b16 %v157
    %v178 = vunpack.c.l.b16 %v158
    %v179 = vunpack.c.l.b16 %v159
    %v180 = vpack.c.b16 %v173, %v172
    %v181 = vpack.c.b16 %v175, %v174
    %v182 = vpack.c.b16 %v177, %v176
    %v183 = vpack.c.b16 %v179, %v178
    %vm188 = vcmask 523264
    %v190 = vsel %vm188, %v151, 0
    %192 = vmatpush.bf16.msra.mxu0 0
    %193 = vmatpush.bf16.msra.mxu0 0
    %194 = vmatpush.bf16.msra.mxu0 0
    %195 = vmatpush.bf16.msra.mxu0 0
    %196 = vmatpush.bf16.msra.mxu0 %v183
    %197 = vmatpush.bf16.msra.mxu0 %v182
    %198 = vmatpush.bf16.msra.mxu0 %v181
    %199 = vmatpush.bf16.msra.mxu0 %v180
    %200 = vmatmul.bf16.gmra.mxu0 %v190
    %v201 = vpop.f32.mrf.mxu0
    %v202 = vadd.f32 %v162, %v201
    %v203 = vpop.f32.mrf.mxu0
    %204 = vdwg.mxu0
    %vm205 = vcmask 64512
    %206 = vst.msk [vmem:[#allocation2] sm:$0xff] %vm205, %v202
    // Predicated region
    $region30: #{qnetwork_forward.1} parent=1 // pred_check
      _
    $region31: #{qnetwork_forward.1} parent=1 // pred_check_branch
      %208 = sbr.rel (0) target = $region33
    $region32: #{qnetwork_forward.1} parent=1 // pred_region
      %210 = vsyncadd [#allocation3], 0
      %s212 = sshll.u32 [#allocation2], 4
      %s213 = int_to_ptr.vmem [resolvable:$true] %s212
      %s214 = sshll.u32 %s7, 4
      %s215 = int_to_ptr.hbm [resolvable:$true] %s214
      %217 = dma.vmem_to_hbm [thread:$0]  %s213, 128, %s215, [#allocation3]
    $region33: #{qnetwork_forward.1} parent=1 // pred_fallthru
      _
    // Predicated region
    $region34: #{qnetwork_forward.1} parent=1 // pred_check
      _
    $region35: #{qnetwork_forward.1} parent=1 // pred_check_branch
      %219 = sbr.rel (0) target = $region37
    $region36: #{qnetwork_forward.1} parent=1 // pred_region
      %221 = dma.done [#allocation3], 128
    $region37: #{qnetwork_forward.1} parent=1 // pred_fallthru
      _
    %222 = vsyncpa [#allocation3], 1

</llo_original>
